<compile_context>
chip_gen: v7x
topology: tpu7x:2x2x1
jax: 0.10.0
libtpu: 0.0.40
codegen_flags: <defaults>
</compile_context>

<pallas_src>
import functools

import jax
import jax.numpy as jnp
from jax.experimental import pallas as pl
from jax.experimental.pallas import tpu as pltpu

_LANES = 128


def _round_up(x, m):
    return ((x + m - 1) // m) * m


def _cdiv(a, b):
    return -(-a // b)


def _choose_tile_rows(max_rows, vocab):
    """Largest row tile (multiple of 128) whose blocks fit a ~16 MiB budget."""
    v_pad = _round_up(max(vocab, 1), _LANES)
    # per-row VMEM per grid step (f32, conservative):
    #   pr logits (2 buffers) + lane-padded pr targets (2 buffers)
    #   + lane-dense md x0/x1/tgt (2 buffers) + resident pr partial outputs
    per_row = (2 * v_pad * 4) + (2 * _LANES * 4) + (6 * 4) + (4 * _LANES * 4)
    budget = 16 * 1024 * 1024          # stays well under 32 MiB scoped (v7x-safe)
    tn = (budget // per_row) // _LANES * _LANES
    tn = max(tn, _LANES)
    tn = min(tn, 2048, _round_up(max_rows, _LANES))
    # TODO(synk): for enormous vocabularies a class-tiled CE would be needed;
    # phone vocabularies in mpvn are small so a single class block is fine.
    return tn


def _make_fused_kernel(ignore_index, gamma, n_md, tile_rows, tiles_per_split):
    """Fused row-tiled kernel.

    Per (tile_rows,) row block it accumulates:
      * pr path: masked cross-entropy partial sums + valid-row counts
        (general C, classes on the lane axis, one-hot gather + lane logsumexp),
      * md path: 2-class focal cross-entropy partial sums, lane-dense
        (rows mapped to lanes, ce = softplus(x_other - x_target)).
    Partials accumulate directly into grid-resident output blocks; the wrapper
    performs the final reductions, means and weighting.
    """
    gamma = float(gamma)

    def kernel(pr_tgt_ref, pr_logits_ref, md_x0_ref, md_x1_ref, md_tgt_ref,
               pr_sum_ref, pr_cnt_ref, md_sum_ref):
        s = pl.program_id(0)          # megacore split axis ("parallel")
        i = pl.program_id(1)          # row-tile sweep ("arbitrary")

        @pl.when(i == 0)
        def _():
            pr_sum_ref[...] = jnp.zeros_like(pr_sum_ref)
            pr_cnt_ref[...] = jnp.zeros_like(pr_cnt_ref)
            md_sum_ref[...] = jnp.zeros_like(md_sum_ref)

        # ---------- phone-recognition CE with ignore_index ----------
        logits = pr_logits_ref[...].astype(jnp.float32)        # (TN, V)
        tgt = pr_tgt_ref[...]                                   # (TN, 1) int32
        tn, v = logits.shape
        col = jax.lax.broadcasted_iota(jnp.int32, (tn, v), 1)
        onehot = col == tgt
        m = jnp.max(logits, axis=-1, keepdims=True)
        lse = m + jnp.log(jnp.sum(jnp.exp(logits - m), axis=-1, keepdims=True))
        tgt_logit = jnp.sum(jnp.where(onehot, logits, 0.0), axis=-1,
                            keepdims=True)
        ce_pr = lse - tgt_logit                                 # (TN, 1)
        # padded rows carry ignore_index, so this mask also drops padding
        valid = (tgt != ignore_index).astype(jnp.float32)       # (TN, 1)
        pr_sum_ref[...] += ce_pr * valid
        pr_cnt_ref[...] += valid

        # ---------- 2-class focal CE, lane-dense (rows -> lanes) ----------
        x0 = md_x0_ref[...].astype(jnp.float32)                 # (TN//128, 128)
        x1 = md_x1_ref[...].astype(jnp.float32)
        t = md_tgt_ref[...]                                     # int32
        d = jnp.where(t == 0, x1 - x0, x0 - x1)                 # other - target
        # ce = logsumexp(x0, x1) - x[target] = softplus(d), stable form
        ce_md = jnp.maximum(d, 0.0) + jnp.log(1.0 + jnp.exp(-jnp.abs(d)))
        pt = jnp.exp(-ce_md)
        omp = jnp.maximum(1.0 - pt, 0.0)                        # clamp fp noise
        if gamma == 1.0:
            w = omp
        elif gamma == 2.0:
            w = omp * omp
        else:
            # general gamma via exp/log; omp == 0 maps to 0
            w = jnp.where(omp > 0.0,
                          jnp.exp(gamma * jnp.log(jnp.maximum(omp, 1e-30))),
                          0.0)
        # mask padded elements via the global flat element index
        blk = s * tiles_per_split + i
        sub = jax.lax.broadcasted_iota(jnp.int32, t.shape, 0)
        lane = jax.lax.broadcasted_iota(jnp.int32, t.shape, 1)
        flat = blk * tile_rows + sub * _LANES + lane
        md_mask = (flat < n_md).astype(jnp.float32)
        md_sum_ref[...] += w * ce_md * md_mask

    return kernel


def _weakly_loss_sums(pr_log_probs, pr_targets, md_log_probs, md_targets, *,
                      ignore_index, gamma):
    """Returns (pr_loss_sum, pr_valid_count, md_focal_sum) via one pallas_call."""
    n_pr, v = pr_log_probs.shape
    n_md, n_md_classes = md_log_probs.shape
    if n_md_classes != 2:
        # TODO(synk): general-C focal path (the mpvn MD head is binary).
        raise NotImplementedError("fused kernel assumes a 2-class md head")

    max_rows = max(n_pr, n_md, 1)
    tn = _choose_tile_rows(max_rows, v)
    tiles = _cdiv(max_rows, tn)
    splits = 2 if tiles >= 2 else 1          # 2-TC split on v7x; no-op otherwise
    tiles_per_split = _cdiv(tiles, splits)
    np_rows = tn * splits * tiles_per_split
    nb = splits * tiles_per_split
    sub_md = tn // _LANES

    # ---- pad + lay out inputs (padded pr targets = ignore_index) ----
    pr_logits = jnp.pad(pr_log_probs, ((0, np_rows - n_pr), (0, 0)))
    pr_tgt = jnp.pad(pr_targets.astype(jnp.int32), (0, np_rows - n_pr),
                     constant_values=ignore_index).reshape(np_rows, 1)
    x0 = jnp.pad(md_log_probs[:, 0],
                 (0, np_rows - n_md)).reshape(nb, sub_md, _LANES)
    x1 = jnp.pad(md_log_probs[:, 1],
                 (0, np_rows - n_md)).reshape(nb, sub_md, _LANES)
    md_tgt = jnp.pad(md_targets.astype(jnp.int32),
                     (0, np_rows - n_md)).reshape(nb, sub_md, _LANES)

    kernel = _make_fused_kernel(ignore_index, gamma, n_md, tn, tiles_per_split)

    def row_idx(s, i):
        return (s * tiles_per_split + i, 0)

    def row_idx3(s, i):
        return (s * tiles_per_split + i, 0, 0)

    def acc_idx(s, i):
        return (s, 0, 0)

    pr_part, cnt_part, md_part = pl.pallas_call(
        kernel,
        out_shape=(
            jax.ShapeDtypeStruct((splits, tn, 1), jnp.float32),
            jax.ShapeDtypeStruct((splits, tn, 1), jnp.float32),
            jax.ShapeDtypeStruct((splits, sub_md, _LANES), jnp.float32),
        ),
        grid=(splits, tiles_per_split),
        in_specs=[
            pl.BlockSpec((tn, 1), row_idx),                      # pr targets
            pl.BlockSpec((tn, v), row_idx),                      # pr logits
            pl.BlockSpec((None, sub_md, _LANES), row_idx3),      # md class-0
            pl.BlockSpec((None, sub_md, _LANES), row_idx3),      # md class-1
            pl.BlockSpec((None, sub_md, _LANES), row_idx3),      # md targets
        ],
        out_specs=[
            pl.BlockSpec((None, tn, 1), acc_idx),                # pr loss sums
            pl.BlockSpec((None, tn, 1), acc_idx),                # pr valid cnts
            pl.BlockSpec((None, sub_md, _LANES), acc_idx),       # md focal sums
        ],
        compiler_params=pltpu.CompilerParams(
            dimension_semantics=("parallel", "arbitrary"),
            vmem_limit_bytes=32 * 1024 * 1024),
    )(pr_tgt, pr_logits, x0, x1, md_tgt)

    return jnp.sum(pr_part), jnp.sum(cnt_part), jnp.sum(md_part)


@functools.partial(jax.jit, static_argnames=("ignore_index", "md_weight",
                                             "pr_weight", "gamma"))
def weakly_loss(pr_log_probs, r_os, md_log_probs, score, *,
                ignore_index, md_weight=0.7, pr_weight=0.3, gamma=1.0):
    """Pallas implementation of WeaklyLoss.forward → (loss, pr_loss, md_loss)."""
    n_md = md_log_probs.shape[0]
    pr_sum, pr_cnt, md_sum = _weakly_loss_sums(
        pr_log_probs, r_os.reshape(-1), md_log_probs, score.reshape(-1),
        ignore_index=ignore_index, gamma=gamma)

    if md_weight > 0 and n_md > 0:
        md_loss = md_sum / jnp.float32(n_md)
    else:
        md_loss = jnp.float32(0.0)

    if pr_weight > 0 and r_os.shape[0] != 0:
        # NOTE: if every pr target equals ignore_index this is 0/0 = NaN,
        # matching PyTorch's behaviour in the same degenerate case.
        pr_loss = pr_sum / pr_cnt
    else:
        pr_loss = jnp.float32(0.0)

    loss = md_loss * md_weight + pr_loss * pr_weight
    return loss, pr_loss, md_loss


def _reference(pr_log_probs, r_os, md_log_probs, score, *,
               ignore_index, md_weight=0.7, pr_weight=0.3, gamma=1.0):
    """Pure-JAX reference mirroring the PyTorch module, for verification."""
    md_lp = jax.nn.log_softmax(md_log_probs, axis=-1)
    md_ce = -jnp.take_along_axis(md_lp, score.reshape(-1, 1), axis=-1)[:, 0]
    pt = jnp.exp(-md_ce)
    md_loss = jnp.mean((1.0 - pt) ** gamma * md_ce)

    tgt = r_os.reshape(-1)
    pr_lp = jax.nn.log_softmax(pr_log_probs, axis=-1)
    pr_ce = -jnp.take_along_axis(pr_lp, tgt.reshape(-1, 1), axis=-1)[:, 0]
    valid = (tgt != ignore_index).astype(jnp.float32)
    pr_loss = jnp.sum(pr_ce * valid) / jnp.sum(valid)

    loss = md_loss * md_weight + pr_loss * pr_weight
    return loss, pr_loss, md_loss


if __name__ == "__main__":
    key = jax.random.PRNGKey(0)
    k1, k2, k3, k4 = jax.random.split(key, 4)

    B, T, V = 2, 8, 32          # phone-recognition: (B*T, vocab)
    N = B * T
    NUM_MD_CLASSES = 2          # mispronunciation detection: binary
    IGNORE_INDEX = 0

    pr_log_probs = jax.random.normal(k1, (N, V), dtype=jnp.float32)
    r_os = jax.random.randint(k2, (B, T), 0, V, dtype=jnp.int32)  # some == ignore
    md_log_probs = jax.random.normal(k3, (N, NUM_MD_CLASSES), dtype=jnp.float32)
    score = jax.random.randint(k4, (N,), 0, NUM_MD_CLASSES, dtype=jnp.int32)

    loss, pr_loss, md_loss = weakly_loss(
        pr_log_probs, r_os, md_log_probs, score,
        ignore_index=IGNORE_INDEX, md_weight=0.7, pr_weight=0.3, gamma=1.0)
    jax.block_until_ready((loss, pr_loss, md_loss))

    ref_loss, ref_pr, ref_md = _reference(
        pr_log_probs, r_os, md_log_probs, score,
        ignore_index=IGNORE_INDEX, md_weight=0.7, pr_weight=0.3, gamma=1.0)

    assert jnp.allclose(loss, ref_loss, atol=1e-5), (loss, ref_loss)
    assert jnp.allclose(pr_loss, ref_pr, atol=1e-5), (pr_loss, ref_pr)
    assert jnp.allclose(md_loss, ref_md, atol=1e-5), (md_loss, ref_md)

    print("KERNEL_OK")
</pallas_src>

<mosaic_0001>
module attributes {stable_mosaic.version = 11 : i64} {
  func.func @kernel(%arg0: i32, %arg1: i32, %arg2: memref<128x1xi32, #tpu.memory_space<vmem>>, %arg3: memref<128x32xf32, #tpu.memory_space<vmem>>, %arg4: memref<1x1x128xf32, #tpu.memory_space<vmem>>, %arg5: memref<1x1x128xf32, #tpu.memory_space<vmem>>, %arg6: memref<1x1x128xi32, #tpu.memory_space<vmem>>, %arg7: memref<1x128x1xf32, #tpu.memory_space<vmem>>, %arg8: memref<1x128x1xf32, #tpu.memory_space<vmem>>, %arg9: memref<1x1x128xf32, #tpu.memory_space<vmem>>) attributes {dimension_semantics = [#tpu.dimension_semantics<parallel>, #tpu.dimension_semantics<arbitrary>], iteration_bounds = array<i64: 1, 1>, scalar_prefetch = 0 : i64, scratch_operands = 0 : i64, tpu.core_type = #tpu.core_type<tc>, window_params = [{transform_indices = @transform_0, window_bounds = array<i64: 128, 1>}, {transform_indices = @transform_1, window_bounds = array<i64: 128, 32>}, {transform_indices = @transform_2, window_bounds = array<i64: 1, 1, 128>}, {transform_indices = @transform_3, window_bounds = array<i64: 1, 1, 128>}, {transform_indices = @transform_4, window_bounds = array<i64: 1, 1, 128>}, {transform_indices = @transform_5, window_bounds = array<i64: 1, 128, 1>}, {transform_indices = @transform_6, window_bounds = array<i64: 1, 128, 1>}, {transform_indices = @transform_7, window_bounds = array<i64: 1, 1, 128>}]} {
    %c0_i32 = arith.constant 0 : i32
    %0 = arith.cmpi eq, %arg1, %c0_i32 : i32
    %1 = arith.extui %0 : i1 to i32
    %c0_i32_0 = arith.constant 0 : i32
    %2 = arith.cmpi ne, %1, %c0_i32_0 : i32
    scf.if %2 {
      %cst_43 = arith.constant 0.000000e+00 : f32
      %89 = vector.broadcast %cst_43 : f32 to vector<128x1xf32>
      %c0_44 = arith.constant 0 : index
      %c0_45 = arith.constant 0 : index
      %c0_46 = arith.constant 0 : index
      %90 = vector.load %arg7[%c0_44, %c0_45, %c0_46] : memref<1x128x1xf32, #tpu.memory_space<vmem>>, vector<1x128x1xf32>
      %91 = vector.shape_cast %90 : vector<1x128x1xf32> to vector<128x1xf32>
      %92 = vector.shape_cast %89 : vector<128x1xf32> to vector<1x128x1xf32>
      tpu.vector_store %arg7[%c0_44, %c0_45, %c0_46], %92 {strides = array<i32>} : memref<1x128x1xf32, #tpu.memory_space<vmem>>, vector<1x128x1xf32>,
      %cst_47 = arith.constant 0.000000e+00 : f32
      %93 = vector.broadcast %cst_47 : f32 to vector<128x1xf32>
      %c0_48 = arith.constant 0 : index
      %c0_49 = arith.constant 0 : index
      %c0_50 = arith.constant 0 : index
      %94 = vector.load %arg8[%c0_48, %c0_49, %c0_50] : memref<1x128x1xf32, #tpu.memory_space<vmem>>, vector<1x128x1xf32>
      %95 = vector.shape_cast %94 : vector<1x128x1xf32> to vector<128x1xf32>
      %96 = vector.shape_cast %93 : vector<128x1xf32> to vector<1x128x1xf32>
      tpu.vector_store %arg8[%c0_48, %c0_49, %c0_50], %96 {strides = array<i32>} : memref<1x128x1xf32, #tpu.memory_space<vmem>>, vector<1x128x1xf32>,
      %cst_51 = arith.constant 0.000000e+00 : f32
      %97 = vector.broadcast %cst_51 : f32 to vector<1x128xf32>
      %c0_52 = arith.constant 0 : index
      %c0_53 = arith.constant 0 : index
      %c0_54 = arith.constant 0 : index
      %98 = vector.load %arg9[%c0_52, %c0_53, %c0_54] : memref<1x1x128xf32, #tpu.memory_space<vmem>>, vector<1x1x128xf32>
      %99 = vector.shape_cast %98 : vector<1x1x128xf32> to vector<1x128xf32>
      %100 = vector.shape_cast %97 : vector<1x128xf32> to vector<1x1x128xf32>
      tpu.vector_store %arg9[%c0_52, %c0_53, %c0_54], %100 {strides = array<i32>} : memref<1x1x128xf32, #tpu.memory_space<vmem>>, vector<1x1x128xf32>,
    } else {
    }
    %c0 = arith.constant 0 : index
    %c0_1 = arith.constant 0 : index
    %3 = vector.load %arg3[%c0, %c0_1] : memref<128x32xf32, #tpu.memory_space<vmem>>, vector<128x32xf32>
    %c0_2 = arith.constant 0 : index
    %c0_3 = arith.constant 0 : index
    %4 = vector.load %arg2[%c0_2, %c0_3] : memref<128x1xi32, #tpu.memory_space<vmem>>, vector<128x1xi32>
    %5 = tpu.iota {dimensions = array<i32: 1>} : vector<128x32xi32>
    %6 = vector.broadcast %4 : vector<128x1xi32> to vector<128x32xi32>
    %7 = arith.cmpi eq, %5, %6 : vector<128x32xi32>
    %cst = arith.constant dense<0xFF800000> : vector<128xf32>
    %8 = vector.multi_reduction <maximumf>, %3, %cst [1] : vector<128x32xf32> to vector<128xf32>
    %9 = vector.shape_cast %8 : vector<128xf32> to vector<128x1xf32>
    %10 = vector.broadcast %9 : vector<128x1xf32> to vector<128x32xf32>
    %11 = arith.subf %3, %10 : vector<128x32xf32>
    %12 = math.exp %11 : vector<128x32xf32>
    %cst_4 = arith.constant dense<0.000000e+00> : vector<128xf32>
    %13 = vector.multi_reduction <add>, %12, %cst_4 [1] : vector<128x32xf32> to vector<128xf32>
    %14 = vector.shape_cast %13 : vector<128xf32> to vector<128x1xf32>
    %15 = math.log %14 : vector<128x1xf32>
    %16 = arith.addf %9, %15 : vector<128x1xf32>
    %cst_5 = arith.constant 0.000000e+00 : f32
    %17 = vector.broadcast %cst_5 : f32 to vector<128x32xf32>
    %18 = arith.select %7, %3, %17 : vector<128x32xi1>, vector<128x32xf32>
    %cst_6 = arith.constant dense<0.000000e+00> : vector<128xf32>
    %19 = vector.multi_reduction <add>, %18, %cst_6 [1] : vector<128x32xf32> to vector<128xf32>
    %20 = vector.shape_cast %19 : vector<128xf32> to vector<128x1xf32>
    %21 = arith.subf %16, %20 : vector<128x1xf32>
    %c0_i32_7 = arith.constant 0 : i32
    %22 = vector.broadcast %c0_i32_7 : i32 to vector<128x1xi32>
    %23 = arith.cmpi ne, %4, %22 : vector<128x1xi32>
    %24 = arith.extui %23 : vector<128x1xi1> to vector<128x1xi32>
    %25 = arith.sitofp %24 : vector<128x1xi32> to vector<128x1xf32>
    %c0_8 = arith.constant 0 : index
    %c0_9 = arith.constant 0 : index
    %c0_10 = arith.constant 0 : index
    %26 = vector.load %arg7[%c0_8, %c0_9, %c0_10] : memref<1x128x1xf32, #tpu.memory_space<vmem>>, vector<1x128x1xf32>
    %27 = vector.shape_cast %26 : vector<1x128x1xf32> to vector<128x1xf32>
    %28 = arith.mulf %21, %25 : vector<128x1xf32>
    %29 = arith.addf %27, %28 : vector<128x1xf32>
    %c0_11 = arith.constant 0 : index
    %c0_12 = arith.constant 0 : index
    %c0_13 = arith.constant 0 : index
    %30 = vector.load %arg7[%c0_11, %c0_12, %c0_13] : memref<1x128x1xf32, #tpu.memory_space<vmem>>, vector<1x128x1xf32>
    %31 = vector.shape_cast %30 : vector<1x128x1xf32> to vector<128x1xf32>
    %32 = vector.shape_cast %29 : vector<128x1xf32> to vector<1x128x1xf32>
    tpu.vector_store %arg7[%c0_11, %c0_12, %c0_13], %32 {strides = array<i32>} : memref<1x128x1xf32, #tpu.memory_space<vmem>>, vector<1x128x1xf32>,
    %c0_14 = arith.constant 0 : index
    %c0_15 = arith.constant 0 : index
    %c0_16 = arith.constant 0 : index
    %33 = vector.load %arg8[%c0_14, %c0_15, %c0_16] : memref<1x128x1xf32, #tpu.memory_space<vmem>>, vector<1x128x1xf32>
    %34 = vector.shape_cast %33 : vector<1x128x1xf32> to vector<128x1xf32>
    %35 = arith.addf %34, %25 : vector<128x1xf32>
    %c0_17 = arith.constant 0 : index
    %c0_18 = arith.constant 0 : index
    %c0_19 = arith.constant 0 : index
    %36 = vector.load %arg8[%c0_17, %c0_18, %c0_19] : memref<1x128x1xf32, #tpu.memory_space<vmem>>, vector<1x128x1xf32>
    %37 = vector.shape_cast %36 : vector<1x128x1xf32> to vector<128x1xf32>
    %38 = vector.shape_cast %35 : vector<128x1xf32> to vector<1x128x1xf32>
    tpu.vector_store %arg8[%c0_17, %c0_18, %c0_19], %38 {strides = array<i32>} : memref<1x128x1xf32, #tpu.memory_space<vmem>>, vector<1x128x1xf32>,
    %c0_20 = arith.constant 0 : index
    %c0_21 = arith.constant 0 : index
    %c0_22 = arith.constant 0 : index
    %39 = vector.load %arg4[%c0_20, %c0_21, %c0_22] : memref<1x1x128xf32, #tpu.memory_space<vmem>>, vector<1x1x128xf32>
    %40 = vector.shape_cast %39 : vector<1x1x128xf32> to vector<1x128xf32>
    %c0_23 = arith.constant 0 : index
    %c0_24 = arith.constant 0 : index
    %c0_25 = arith.constant 0 : index
    %41 = vector.load %arg5[%c0_23, %c0_24, %c0_25] : memref<1x1x128xf32, #tpu.memory_space<vmem>>, vector<1x1x128xf32>
    %42 = vector.shape_cast %41 : vector<1x1x128xf32> to vector<1x128xf32>
    %c0_26 = arith.constant 0 : index
    %c0_27 = arith.constant 0 : index
    %c0_28 = arith.constant 0 : index
    %43 = vector.load %arg6[%c0_26, %c0_27, %c0_28] : memref<1x1x128xi32, #tpu.memory_space<vmem>>, vector<1x1x128xi32>
    %44 = vector.shape_cast %43 : vector<1x1x128xi32> to vector<1x128xi32>
    %c0_i32_29 = arith.constant 0 : i32
    %45 = vector.broadcast %c0_i32_29 : i32 to vector<1x128xi32>
    %46 = arith.cmpi eq, %44, %45 : vector<1x128xi32>
    %47 = arith.subf %42, %40 : vector<1x128xf32>
    %48 = arith.subf %40, %42 : vector<1x128xf32>
    %49 = arith.select %46, %47, %48 : vector<1x128xi1>, vector<1x128xf32>
    %cst_30 = arith.constant 0.000000e+00 : f32
    %50 = vector.broadcast %cst_30 : f32 to vector<1x128xf32>
    %51 = arith.maximumf %49, %50 : vector<1x128xf32>
    %52 = math.absf %49 : vector<1x128xf32>
    %cst_31 = arith.constant 0.000000e+00 : f32
    %53 = vector.broadcast %cst_31 : f32 to vector<1x128xf32>
    %54 = arith.subf %53, %52 : vector<1x128xf32>
    %55 = math.exp %54 : vector<1x128xf32>
    %cst_32 = arith.constant 1.000000e+00 : f32
    %56 = vector.broadcast %cst_32 : f32 to vector<1x128xf32>
    %57 = arith.addf %56, %55 : vector<1x128xf32>
    %58 = math.log %57 : vector<1x128xf32>
    %59 = arith.addf %51, %58 : vector<1x128xf32>
    %cst_33 = arith.constant 0.000000e+00 : f32
    %60 = vector.broadcast %cst_33 : f32 to vector<1x128xf32>
    %61 = arith.subf %60, %59 : vector<1x128xf32>
    %62 = math.exp %61 : vector<1x128xf32>
    %cst_34 = arith.constant 1.000000e+00 : f32
    %63 = vector.broadcast %cst_34 : f32 to vector<1x128xf32>
    %64 = arith.subf %63, %62 : vector<1x128xf32>
    %cst_35 = arith.constant 0.000000e+00 : f32
    %65 = vector.broadcast %cst_35 : f32 to vector<1x128xf32>
    %66 = arith.maximumf %64, %65 : vector<1x128xf32>
    %c1_i32 = arith.constant 1 : i32
    %67 = arith.muli %arg0, %c1_i32 : i32
    %68 = arith.addi %67, %arg1 : i32
    %69 = tpu.iota {dimensions = array<i32: 0>} : vector<1x128xi32>
    %70 = tpu.iota {dimensions = array<i32: 1>} : vector<1x128xi32>
    %c128_i32 = arith.constant 128 : i32
    %71 = arith.muli %68, %c128_i32 : i32
    %c128_i32_36 = arith.constant 128 : i32
    %72 = vector.broadcast %c128_i32_36 : i32 to vector<1x128xi32>
    %73 = arith.muli %69, %72 : vector<1x128xi32>
    %74 = vector.broadcast %71 : i32 to vector<1x128xi32>
    %75 = arith.addi %74, %73 : vector<1x128xi32>
    %76 = arith.addi %75, %70 : vector<1x128xi32>
    %c16_i32 = arith.constant 16 : i32
    %77 = vector.broadcast %c16_i32 : i32 to vector<1x128xi32>
    %78 = arith.cmpi slt, %76, %77 : vector<1x128xi32>
    %79 = arith.extui %78 : vector<1x128xi1> to vector<1x128xi32>
    %80 = arith.sitofp %79 : vector<1x128xi32> to vector<1x128xf32>
    %c0_37 = arith.constant 0 : index
    %c0_38 = arith.constant 0 : index
    %c0_39 = arith.constant 0 : index
    %81 = vector.load %arg9[%c0_37, %c0_38, %c0_39] : memref<1x1x128xf32, #tpu.memory_space<vmem>>, vector<1x1x128xf32>
    %82 = vector.shape_cast %81 : vector<1x1x128xf32> to vector<1x128xf32>
    %83 = arith.mulf %66, %59 : vector<1x128xf32>
    %84 = arith.mulf %83, %80 : vector<1x128xf32>
    %85 = arith.addf %82, %84 : vector<1x128xf32>
    %c0_40 = arith.constant 0 : index
    %c0_41 = arith.constant 0 : index
    %c0_42 = arith.constant 0 : index
    %86 = vector.load %arg9[%c0_40, %c0_41, %c0_42] : memref<1x1x128xf32, #tpu.memory_space<vmem>>, vector<1x1x128xf32>
    %87 = vector.shape_cast %86 : vector<1x1x128xf32> to vector<1x128xf32>
    %88 = vector.shape_cast %85 : vector<1x128xf32> to vector<1x1x128xf32>
    tpu.vector_store %arg9[%c0_40, %c0_41, %c0_42], %88 {strides = array<i32>} : memref<1x1x128xf32, #tpu.memory_space<vmem>>, vector<1x1x128xf32>,
    return
  }
  func.func @transform_0(%arg0: i32, %arg1: i32) -> (i32, i32) {
    %c1_i32 = arith.constant 1 : i32
    %0 = arith.muli %arg0, %c1_i32 : i32
    %1 = arith.addi %0, %arg1 : i32
    %c0_i32 = arith.constant 0 : i32
    %c0_i32_0 = arith.constant 0 : i32
    return %1, %c0_i32 : i32, i32
  }
  func.func @transform_1(%arg0: i32, %arg1: i32) -> (i32, i32) {
    %c1_i32 = arith.constant 1 : i32
    %0 = arith.muli %arg0, %c1_i32 : i32
    %1 = arith.addi %0, %arg1 : i32
    %c0_i32 = arith.constant 0 : i32
    %c0_i32_0 = arith.constant 0 : i32
    return %1, %c0_i32 : i32, i32
  }
  func.func @transform_2(%arg0: i32, %arg1: i32) -> (i32, i32, i32) {
    %c1_i32 = arith.constant 1 : i32
    %0 = arith.muli %arg0, %c1_i32 : i32
    %1 = arith.addi %0, %arg1 : i32
    %c0_i32 = arith.constant 0 : i32
    %c0_i32_0 = arith.constant 0 : i32
    %c0_i32_1 = arith.constant 0 : i32
    return %1, %c0_i32, %c0_i32_0 : i32, i32, i32
  }
  func.func @transform_3(%arg0: i32, %arg1: i32) -> (i32, i32, i32) {
    %c1_i32 = arith.constant 1 : i32
    %0 = arith.muli %arg0, %c1_i32 : i32
    %1 = arith.addi %0, %arg1 : i32
    %c0_i32 = arith.constant 0 : i32
    %c0_i32_0 = arith.constant 0 : i32
    %c0_i32_1 = arith.constant 0 : i32
    return %1, %c0_i32, %c0_i32_0 : i32, i32, i32
  }
  func.func @transform_4(%arg0: i32, %arg1: i32) -> (i32, i32, i32) {
    %c1_i32 = arith.constant 1 : i32
    %0 = arith.muli %arg0, %c1_i32 : i32
    %1 = arith.addi %0, %arg1 : i32
    %c0_i32 = arith.constant 0 : i32
    %c0_i32_0 = arith.constant 0 : i32
    %c0_i32_1 = arith.constant 0 : i32
    return %1, %c0_i32, %c0_i32_0 : i32, i32, i32
  }
  func.func @transform_5(%arg0: i32, %arg1: i32) -> (i32, i32, i32) {
    %c0_i32 = arith.constant 0 : i32
    %c0_i32_0 = arith.constant 0 : i32
    %c0_i32_1 = arith.constant 0 : i32
    return %arg0, %c0_i32, %c0_i32_0 : i32, i32, i32
  }
  func.func @transform_6(%arg0: i32, %arg1: i32) -> (i32, i32, i32) {
    %c0_i32 = arith.constant 0 : i32
    %c0_i32_0 = arith.constant 0 : i32
    %c0_i32_1 = arith.constant 0 : i32
    return %arg0, %c0_i32, %c0_i32_0 : i32, i32, i32
  }
  func.func @transform_7(%arg0: i32, %arg1: i32) -> (i32, i32, i32) {
    %c0_i32 = arith.constant 0 : i32
    %c0_i32_0 = arith.constant 0 : i32
    %c0_i32_1 = arith.constant 0 : i32
    return %arg0, %c0_i32, %c0_i32_0 : i32, i32, i32
  }
}

</mosaic_0001>

<llo_original>
// kernel: weakly_loss.1
$region0: #{weakly_loss.1}
  #allocation0 [shape = 'u32[]', space=smem, size = 0x4, offset = 0x4, fixed_abs, tag = 'smem constant byte address 0x4 - core index']
  #allocation1 [shape = 'u32[144,128]{1,0:T(1,128)}', space=vmem, size = 0x12000, scoped, tag = 'internal scratch']
  %s0 = inlined_call_operand.vmem [shape: s32[128,1], index: 0, kind: input, shape index: {}]
  %s1 = inlined_call_operand.vmem [shape: f32[128,32], index: 1, kind: input, shape index: {}]
  %s2 = inlined_call_operand.vmem [shape: f32[1,1,128], index: 2, kind: input, shape index: {}]
  %s3 = inlined_call_operand.vmem [shape: f32[1,1,128], index: 3, kind: input, shape index: {}]
  %s4 = inlined_call_operand.vmem [shape: s32[1,1,128], index: 4, kind: input, shape index: {}]
  %s5 = inlined_call_operand.vmem [shape: f32[1,128,1], index: 5, kind: output, shape index: {0}]
  %s6 = inlined_call_operand.vmem [shape: f32[1,128,1], index: 6, kind: output, shape index: {1}]
  %s7 = inlined_call_operand.vmem [shape: f32[1,1,128], index: 7, kind: output, shape index: {2}]
  %8 = xla_tuple %s5, %s6, %s7
  %s9 = sld [smem:[#allocation0]]
  $region50: #{weakly_loss.1} parent=0
    _
  %s11 = ssub.s32 1, %s9
  %s12 = scalar_select 0, %s11, %s9
  // Predicated region
  $region2: #{weakly_loss.1} parent=0 // pred_check
    _
  $region3: #{weakly_loss.1} parent=0 // pred_check_branch
    %14 = sbr.rel (0) target = $region5
  $region4: #{weakly_loss.1} parent=0 // pred_region
    %s15 = sadd.s32 0, 0
    %s16 = smul.u32 16, %s15
    %p17 = scmp.lt.s32.totalorder %s16, 15
    %s18 = scalar_select %p17, %s16, 15
    %s19 = smul.addr %s18, 8
    %s20 = scalar_lea.vmem %s0, %s19
    %s21 = sadd.s32 0, 0
    %s22 = smul.u32 16, %s21
  $region5: #{weakly_loss.1} parent=0 // pred_fallthru
    _
  // Predicated region
  $region6: #{weakly_loss.1} parent=0 // pred_check
    _
  $region7: #{weakly_loss.1} parent=0 // pred_check_branch
    %24 = sbr.rel (0) target = $region9
  $region8: #{weakly_loss.1} parent=0 // pred_region
    %s25 = sadd.s32 0, 0
    %s26 = smul.u32 16, %s25
    %p27 = scmp.lt.s32.totalorder %s26, 15
    %s28 = scalar_select %p27, %s26, 15
    %s29 = smul.addr %s28, 8
    %s30 = scalar_lea.vmem %s1, %s29
    %s31 = sadd.s32 0, 0
    %s32 = smul.u32 16, %s31
  $region9: #{weakly_loss.1} parent=0 // pred_fallthru
    _
  // Predicated region
  $region10: #{weakly_loss.1} parent=0 // pred_check
    _
  $region11: #{weakly_loss.1} parent=0 // pred_check_branch
    %34 = sbr.rel (0) target = $region13
  $region12: #{weakly_loss.1} parent=0 // pred_region
    %s35 = sadd.s32 0, 0
    %p36 = scmp.lt.s32.totalorder %s35, 0
    %s37 = scalar_select %p36, %s35, 0
    %s38 = scalar_lea.vmem %s2, %s37
    %s39 = sadd.s32 0, 0
  $region13: #{weakly_loss.1} parent=0 // pred_fallthru
    _
  // Predicated region
  $region14: #{weakly_loss.1} parent=0 // pred_check
    _
  $region15: #{weakly_loss.1} parent=0 // pred_check_branch
    %41 = sbr.rel (0) target = $region17
  $region16: #{weakly_loss.1} parent=0 // pred_region
    %s42 = sadd.s32 0, 0
    %p43 = scmp.lt.s32.totalorder %s42, 0
    %s44 = scalar_select %p43, %s42, 0
    %s45 = scalar_lea.vmem %s3, %s44
    %s46 = sadd.s32 0, 0
  $region17: #{weakly_loss.1} parent=0 // pred_fallthru
    _
  // Predicated region
  $region18: #{weakly_loss.1} parent=0 // pred_check
    _
  $region19: #{weakly_loss.1} parent=0 // pred_check_branch
    %48 = sbr.rel (0) target = $region21
  $region20: #{weakly_loss.1} parent=0 // pred_region
    %s49 = sadd.s32 0, 0
    %p50 = scmp.lt.s32.totalorder %s49, 0
    %s51 = scalar_select %p50, %s49, 0
    %s52 = scalar_lea.vmem %s4, %s51
    %s53 = sadd.s32 0, 0
  $region21: #{weakly_loss.1} parent=0 // pred_fallthru
    _
  %s54 = sadd.s32 0, 0
  %s55 = smul.u32 16, %s54
  %p56 = scmp.lt.s32.totalorder %s55, 15
  %s57 = scalar_select %p56, %s55, 15
  %s58 = smul.addr %s57, 8
  %s59 = scalar_lea.vmem %s0, %s58
  %s60 = sadd.s32 0, 0
  %s61 = smul.u32 16, %s60
  %p62 = scmp.lt.s32.totalorder %s61, 15
  %s63 = scalar_select %p62, %s61, 15
  %s64 = smul.addr %s63, 8
  %s65 = scalar_lea.vmem %s1, %s64
  %s66 = sadd.s32 0, 0
  %p67 = scmp.lt.s32.totalorder %s66, 0
  %s68 = scalar_select %p67, %s66, 0
  %s69 = scalar_lea.vmem %s2, %s68
  %s70 = sadd.s32 0, 0
  %p71 = scmp.lt.s32.totalorder %s70, 0
  %s72 = scalar_select %p71, %s70, 0
  %s73 = scalar_lea.vmem %s3, %s72
  %s74 = sadd.s32 0, 0
  %p75 = scmp.lt.s32.totalorder %s74, 0
  %s76 = scalar_select %p75, %s74, 0
  %s77 = scalar_lea.vmem %s4, %s76
  %s78 = sadd.s32 0, 0
  %s79 = smul.u32 16, %s78
  %p80 = scmp.lt.s32.totalorder %s79, 15
  %s81 = scalar_select %p80, %s79, 15
  %s82 = smul.addr %s81, 8
  %s83 = scalar_lea.vmem %s0, %s82
  %s84 = sadd.s32 0, 0
  %s85 = smul.u32 16, %s84
  %s86 = sadd.s32 0, 0
  %s87 = smul.u32 16, %s86
  %p88 = scmp.lt.s32.totalorder %s87, 15
  %s89 = scalar_select %p88, %s87, 15
  %s90 = smul.addr %s89, 8
  %s91 = scalar_lea.vmem %s1, %s90
  %s92 = sadd.s32 0, 0
  %s93 = smul.u32 16, %s92
  %s94 = sadd.s32 0, 0
  %p95 = scmp.lt.s32.totalorder %s94, 0
  %s96 = scalar_select %p95, %s94, 0
  %s97 = scalar_lea.vmem %s2, %s96
  %s98 = sadd.s32 0, 0
  %s99 = sadd.s32 0, 0
  %p100 = scmp.lt.s32.totalorder %s99, 0
  %s101 = scalar_select %p100, %s99, 0
  %s102 = scalar_lea.vmem %s3, %s101
  %s103 = sadd.s32 0, 0
  %s104 = sadd.s32 0, 0
  %p105 = scmp.lt.s32.totalorder %s104, 0
  %s106 = scalar_select %p105, %s104, 0
  %s107 = scalar_lea.vmem %s4, %s106
  %s108 = sadd.s32 0, 0
  %p109 = scmp.eq.s32.totalorder 0, 0
  // Predicated region
  $region22: #{weakly_loss.1} parent=0 // pred_check
    %p110 = pneg %p109
  $region23: #{weakly_loss.1} parent=0 // pred_check_branch
    %112 = sbr.rel (%p110) target = $region25
  $region24: #{weakly_loss.1} parent=0 // pred_region
    %vm113 = vcmask 7168
    %114 = vst.msk [vmem:[%s5] sm:$0xff] %vm113, 0.0
    %115 = vst.msk [vmem:[%s5 + $0x8] sm:$0xff] %vm113, 0.0
    %116 = vst.msk [vmem:[%s5 + $0x10] sm:$0xff] %vm113, 0.0
    %117 = vst.msk [vmem:[%s5 + $0x18] sm:$0xff] %vm113, 0.0
    %118 = vst.msk [vmem:[%s5 + $0x20] sm:$0xff] %vm113, 0.0
    %119 = vst.msk [vmem:[%s5 + $0x28] sm:$0xff] %vm113, 0.0
    %120 = vst.msk [vmem:[%s5 + $0x30] sm:$0xff] %vm113, 0.0
    %121 = vst.msk [vmem:[%s5 + $0x38] sm:$0xff] %vm113, 0.0
    %122 = vst.msk [vmem:[%s5 + $0x40] sm:$0xff] %vm113, 0.0
    %123 = vst.msk [vmem:[%s5 + $0x48] sm:$0xff] %vm113, 0.0
    %124 = vst.msk [vmem:[%s5 + $0x50] sm:$0xff] %vm113, 0.0
    %125 = vst.msk [vmem:[%s5 + $0x58] sm:$0xff] %vm113, 0.0
    %126 = vst.msk [vmem:[%s5 + $0x60] sm:$0xff] %vm113, 0.0
    %127 = vst.msk [vmem:[%s5 + $0x68] sm:$0xff] %vm113, 0.0
    %128 = vst.msk [vmem:[%s5 + $0x70] sm:$0xff] %vm113, 0.0
    %129 = vst.msk [vmem:[%s5 + $0x78] sm:$0xff] %vm113, 0.0
    %130 = vst.msk [vmem:[%s6] sm:$0xff] %vm113, 0.0
    %131 = vst.msk [vmem:[%s6 + $0x8] sm:$0xff] %vm113, 0.0
    %132 = vst.msk [vmem:[%s6 + $0x10] sm:$0xff] %vm113, 0.0
    %133 = vst.msk [vmem:[%s6 + $0x18] sm:$0xff] %vm113, 0.0
    %134 = vst.msk [vmem:[%s6 + $0x20] sm:$0xff] %vm113, 0.0
    %135 = vst.msk [vmem:[%s6 + $0x28] sm:$0xff] %vm113, 0.0
    %136 = vst.msk [vmem:[%s6 + $0x30] sm:$0xff] %vm113, 0.0
    %137 = vst.msk [vmem:[%s6 + $0x38] sm:$0xff] %vm113, 0.0
    %138 = vst.msk [vmem:[%s6 + $0x40] sm:$0xff] %vm113, 0.0
    %139 = vst.msk [vmem:[%s6 + $0x48] sm:$0xff] %vm113, 0.0
    %140 = vst.msk [vmem:[%s6 + $0x50] sm:$0xff] %vm113, 0.0
    %141 = vst.msk [vmem:[%s6 + $0x58] sm:$0xff] %vm113, 0.0
    %142 = vst.msk [vmem:[%s6 + $0x60] sm:$0xff] %vm113, 0.0
    %143 = vst.msk [vmem:[%s6 + $0x68] sm:$0xff] %vm113, 0.0
    %144 = vst.msk [vmem:[%s6 + $0x70] sm:$0xff] %vm113, 0.0
    %145 = vst.msk [vmem:[%s6 + $0x78] sm:$0xff] %vm113, 0.0
    %146 = vst [vmem:[%s7] sm:$0x1] 0.0
  $region25: #{weakly_loss.1} parent=0 // pred_fallthru
    _
  %v147 = vld [vmem:[%s91] sm:$0xff]
  %v148 = vld [vmem:[%s91 + $0x8] sm:$0xff]
  %v149 = vld [vmem:[%s91 + $0x10] sm:$0xff]
  %v150 = vld [vmem:[%s91 + $0x18] sm:$0xff]
  %v151 = vld [vmem:[%s91 + $0x20] sm:$0xff]
  %v152 = vld [vmem:[%s91 + $0x28] sm:$0xff]
  %v153 = vld [vmem:[%s91 + $0x30] sm:$0xff]
  %v154 = vld [vmem:[%s91 + $0x38] sm:$0xff]
  %v155 = vld [vmem:[%s91 + $0x40] sm:$0xff]
  %v156 = vld [vmem:[%s91 + $0x48] sm:$0xff]
  %v157 = vld [vmem:[%s91 + $0x50] sm:$0xff]
  %v158 = vld [vmem:[%s91 + $0x58] sm:$0xff]
  %v159 = vld [vmem:[%s91 + $0x60] sm:$0xff]
  %v160 = vld [vmem:[%s91 + $0x68] sm:$0xff]
  %v161 = vld [vmem:[%s91 + $0x70] sm:$0xff]
  %v162 = vld [vmem:[%s91 + $0x78] sm:$0xff]
  %v163 = vld [vmem:[%s83] sm:$0xff]
  %v164 = vld [vmem:[%s83 + $0x8] sm:$0xff]
  %v165 = vld [vmem:[%s83 + $0x10] sm:$0xff]
  %v166 = vld [vmem:[%s83 + $0x18] sm:$0xff]
  %v167 = vld [vmem:[%s83 + $0x20] sm:$0xff]
  %v168 = vld [vmem:[%s83 + $0x28] sm:$0xff]
  %v169 = vld [vmem:[%s83 + $0x30] sm:$0xff]
  %v170 = vld [vmem:[%s83 + $0x38] sm:$0xff]
  %v171 = vld [vmem:[%s83 + $0x40] sm:$0xff]
  %v172 = vld [vmem:[%s83 + $0x48] sm:$0xff]
  %v173 = vld [vmem:[%s83 + $0x50] sm:$0xff]
  %v174 = vld [vmem:[%s83 + $0x58] sm:$0xff]
  %v175 = vld [vmem:[%s83 + $0x60] sm:$0xff]
  %v176 = vld [vmem:[%s83 + $0x68] sm:$0xff]
  %v177 = vld [vmem:[%s83 + $0x70] sm:$0xff]
  %v178 = vld [vmem:[%s83 + $0x78] sm:$0xff]
  %v179 = vlaneseq
  %v180 = vand.u32 %v179, 127
  %181 = vset.pattern.permute.xlu0 0
  %182 = vperm.xlu0 %181, %v163
  %v183 = vpop.permute.xlu0 %182
  %184 = vset.pattern.permute.xlu0 0
  %185 = vperm.xlu0 %184, %v164
  %v186 = vpop.permute.xlu0 %185
  %187 = vset.pattern.permute.xlu0 0
  %188 = vperm.xlu0 %187, %v165
  %v189 = vpop.permute.xlu0 %188
  %190 = vset.pattern.permute.xlu0 0
  %191 = vperm.xlu0 %190, %v166
  %v192 = vpop.permute.xlu0 %191
  %193 = vset.pattern.permute.xlu0 0
  %194 = vperm.xlu0 %193, %v167
  %v195 = vpop.permute.xlu0 %194
  %196 = vset.pattern.permute.xlu0 0
  %197 = vperm.xlu0 %196, %v168
  %v198 = vpop.permute.xlu0 %197
  %199 = vset.pattern.permute.xlu0 0
  %200 = vperm.xlu0 %199, %v169
  %v201 = vpop.permute.xlu0 %200
  %202 = vset.pattern.permute.xlu0 0
  %203 = vperm.xlu0 %202, %v170
  %v204 = vpop.permute.xlu0 %203
  %205 = vset.pattern.permute.xlu0 0
  %206 = vperm.xlu0 %205, %v171
  %v207 = vpop.permute.xlu0 %206
  %208 = vset.pattern.permute.xlu0 0
  %209 = vperm.xlu0 %208, %v172
  %v210 = vpop.permute.xlu0 %209
  %211 = vset.pattern.permute.xlu0 0
  %212 = vperm.xlu0 %211, %v173
  %v213 = vpop.permute.xlu0 %212
  %214 = vset.pattern.permute.xlu0 0
  %215 = vperm.xlu0 %214, %v174
  %v216 = vpop.permute.xlu0 %215
  %217 = vset.pattern.permute.xlu0 0
  %218 = vperm.xlu0 %217, %v175
  %v219 = vpop.permute.xlu0 %218
  %220 = vset.pattern.permute.xlu0 0
  %221 = vperm.xlu0 %220, %v176
  %v222 = vpop.permute.xlu0 %221
  %223 = vset.pattern.permute.xlu0 0
  %224 = vperm.xlu0 %223, %v177
  %v225 = vpop.permute.xlu0 %224
  %226 = vset.pattern.permute.xlu0 0
  %227 = vperm.xlu0 %226, %v178
  %v228 = vpop.permute.xlu0 %227
  %vm229 = vcmp.eq.s32.totalorder %v180, %v183
  %vm230 = vcmp.eq.s32.totalorder %v180, %v186
  %vm231 = vcmp.eq.s32.totalorder %v180, %v189
  %vm232 = vcmp.eq.s32.totalorder %v180, %v192
  %vm233 = vcmp.eq.s32.totalorder %v180, %v195
  %vm234 = vcmp.eq.s32.totalorder %v180, %v198
  %vm235 = vcmp.eq.s32.totalorder %v180, %v201
  %vm236 = vcmp.eq.s32.totalorder %v180, %v204
  %vm237 = vcmp.eq.s32.totalorder %v180, %v207
  %vm238 = vcmp.eq.s32.totalorder %v180, %v210
  %vm239 = vcmp.eq.s32.totalorder %v180, %v213
  %vm240 = vcmp.eq.s32.totalorder %v180, %v216
  %vm241 = vcmp.eq.s32.totalorder %v180, %v219
  %vm242 = vcmp.eq.s32.totalorder %v180, %v222
  %vm243 = vcmp.eq.s32.totalorder %v180, %v225
  %vm244 = vcmp.eq.s32.totalorder %v180, %v228
  %vm245 = vcmask 261120
  %v246 = vsel %vm245, %v147, -inf
  %247 = vmax.xlane.f32.xlu0 %v246
  %v248 = vpop.xlane.xlu0 %247
  %v249 = vsel %vm245, %v148, -inf
  %250 = vmax.xlane.f32.xlu0 %v249
  %v251 = vpop.xlane.xlu0 %250
  %v252 = vsel %vm245, %v149, -inf
  %253 = vmax.xlane.f32.xlu0 %v252
  %v254 = vpop.xlane.xlu0 %253
  %v255 = vsel %vm245, %v150, -inf
  %256 = vmax.xlane.f32.xlu0 %v255
  %v257 = vpop.xlane.xlu0 %256
  %v258 = vsel %vm245, %v151, -inf
  %259 = vmax.xlane.f32.xlu0 %v258
  %v260 = vpop.xlane.xlu0 %259
  %v261 = vsel %vm245, %v152, -inf
  %262 = vmax.xlane.f32.xlu0 %v261
  %v263 = vpop.xlane.xlu0 %262
  %v264 = vsel %vm245, %v153, -inf
  %265 = vmax.xlane.f32.xlu0 %v264
  %v266 = vpop.xlane.xlu0 %265
  %v267 = vsel %vm245, %v154, -inf
  %268 = vmax.xlane.f32.xlu0 %v267
  %v269 = vpop.xlane.xlu0 %268
  %v270 = vsel %vm245, %v155, -inf
  %271 = vmax.xlane.f32.xlu0 %v270
  %v272 = vpop.xlane.xlu0 %271
  %v273 = vsel %vm245, %v156, -inf
  %274 = vmax.xlane.f32.xlu0 %v273
  %v275 = vpop.xlane.xlu0 %274
  %v276 = vsel %vm245, %v157, -inf
  %277 = vmax.xlane.f32.xlu0 %v276
  %v278 = vpop.xlane.xlu0 %277
  %v279 = vsel %vm245, %v158, -inf
  %280 = vmax.xlane.f32.xlu0 %v279
  %v281 = vpop.xlane.xlu0 %280
  %v282 = vsel %vm245, %v159, -inf
  %283 = vmax.xlane.f32.xlu0 %v282
  %v284 = vpop.xlane.xlu0 %283
  %v285 = vsel %vm245, %v160, -inf
  %286 = vmax.xlane.f32.xlu0 %v285
  %v287 = vpop.xlane.xlu0 %286
  %v288 = vsel %vm245, %v161, -inf
  %289 = vmax.xlane.f32.xlu0 %v288
  %v290 = vpop.xlane.xlu0 %289
  %v291 = vsel %vm245, %v162, -inf
  %292 = vmax.xlane.f32.xlu0 %v291
  %v293 = vpop.xlane.xlu0 %292
  %v294 = vsub.f32 %v147, %v248
  %v295 = vsub.f32 %v148, %v251
  %v296 = vsub.f32 %v149, %v254
  %v297 = vsub.f32 %v150, %v257
  %v298 = vsub.f32 %v151, %v260
  %v299 = vsub.f32 %v152, %v263
  %v300 = vsub.f32 %v153, %v266
  %v301 = vsub.f32 %v154, %v269
  %v302 = vsub.f32 %v155, %v272
  %v303 = vsub.f32 %v156, %v275
  %v304 = vsub.f32 %v157, %v278
  %v305 = vsub.f32 %v158, %v281
  %v306 = vsub.f32 %v159, %v284
  %v307 = vsub.f32 %v160, %v287
  %v308 = vsub.f32 %v161, %v290
  %v309 = vsub.f32 %v162, %v293
  %v310 = vmul.f32 %v294, 1.442695
  %v311 = vpow.pop %v310
  %v312 = vmul.f32 %v295, 1.442695
  %v313 = vpow.pop %v312
  %v314 = vmul.f32 %v296, 1.442695
  %v315 = vpow.pop %v314
  %v316 = vmul.f32 %v297, 1.442695
  %v317 = vpow.pop %v316
  %v318 = vmul.f32 %v298, 1.442695
  %v319 = vpow.pop %v318
  %v320 = vmul.f32 %v299, 1.442695
  %v321 = vpow.pop %v320
  %v322 = vmul.f32 %v300, 1.442695
  %v323 = vpow.pop %v322
  %v324 = vmul.f32 %v301, 1.442695
  %v325 = vpow.pop %v324
  %v326 = vmul.f32 %v302, 1.442695
  %v327 = vpow.pop %v326
  %v328 = vmul.f32 %v303, 1.442695
  %v329 = vpow.pop %v328
  %v330 = vmul.f32 %v304, 1.442695
  %v331 = vpow.pop %v330
  %v332 = vmul.f32 %v305, 1.442695
  %v333 = vpow.pop %v332
  %v334 = vmul.f32 %v306, 1.442695
  %v335 = vpow.pop %v334
  %v336 = vmul.f32 %v307, 1.442695
  %v337 = vpow.pop %v336
  %v338 = vmul.f32 %v308, 1.442695
  %v339 = vpow.pop %v338
  %v340 = vmul.f32 %v309, 1.442695
  %v341 = vpow.pop %v340
  %v342 = vsel %vm245, %v311, 0.0
  %343 = vadd.xlane.f32.xlu0 %v342
  %v344 = vpop.xlane.xlu0 %343
  %v345 = vsel %vm245, %v313, 0.0
  %346 = vadd.xlane.f32.xlu0 %v345
  %v347 = vpop.xlane.xlu0 %346
  %v348 = vsel %vm245, %v315, 0.0
  %349 = vadd.xlane.f32.xlu0 %v348
  %v350 = vpop.xlane.xlu0 %349
  %v351 = vsel %vm245, %v317, 0.0
  %352 = vadd.xlane.f32.xlu0 %v351
  %v353 = vpop.xlane.xlu0 %352
  %v354 = vsel %vm245, %v319, 0.0
  %355 = vadd.xlane.f32.xlu0 %v354
  %v356 = vpop.xlane.xlu0 %355
  %v357 = vsel %vm245, %v321, 0.0
  %358 = vadd.xlane.f32.xlu0 %v357
  %v359 = vpop.xlane.xlu0 %358
  %v360 = vsel %vm245, %v323, 0.0
  %361 = vadd.xlane.f32.xlu0 %v360
  %v362 = vpop.xlane.xlu0 %361
  %v363 = vsel %vm245, %v325, 0.0
  %364 = vadd.xlane.f32.xlu0 %v363
  %v365 = vpop.xlane.xlu0 %364
  %v366 = vsel %vm245, %v327, 0.0
  %367 = vadd.xlane.f32.xlu0 %v366
  %v368 = vpop.xlane.xlu0 %367
  %v369 = vsel %vm245, %v329, 0.0
  %370 = vadd.xlane.f32.xlu0 %v369
  %v371 = vpop.xlane.xlu0 %370
  %v372 = vsel %vm245, %v331, 0.0
  %373 = vadd.xlane.f32.xlu0 %v372
  %v374 = vpop.xlane.xlu0 %373
  %v375 = vsel %vm245, %v333, 0.0
  %376 = vadd.xlane.f32.xlu0 %v375
  %v377 = vpop.xlane.xlu0 %376
  %v378 = vsel %vm245, %v335, 0.0
  %379 = vadd.xlane.f32.xlu0 %v378
  %v380 = vpop.xlane.xlu0 %379
  %v381 = vsel %vm245, %v337, 0.0
  %382 = vadd.xlane.f32.xlu0 %v381
  %v383 = vpop.xlane.xlu0 %382
  %v384 = vsel %vm245, %v339, 0.0
  %385 = vadd.xlane.f32.xlu0 %v384
  %v386 = vpop.xlane.xlu0 %385
  %v387 = vsel %vm245, %v341, 0.0
  %388 = vadd.xlane.f32.xlu0 %v387
  %v389 = vpop.xlane.xlu0 %388
  %v390 = vlog2.pop %v344
  %v391 = vmul.f32 %v390, 0.6931472
  %v392 = vlog2.pop %v347
  %v393 = vmul.f32 %v392, 0.6931472
  %v394 = vlog2.pop %v350
  %v395 = vmul.f32 %v394, 0.6931472
  %v396 = vlog2.pop %v353
  %v397 = vmul.f32 %v396, 0.6931472
  %v398 = vlog2.pop %v356
  %v399 = vmul.f32 %v398, 0.6931472
  %v400 = vlog2.pop %v359
  %v401 = vmul.f32 %v400, 0.6931472
  %v402 = vlog2.pop %v362
  %v403 = vmul.f32 %v402, 0.6931472
  %v404 = vlog2.pop %v365
  %v405 = vmul.f32 %v404, 0.6931472
  %v406 = vlog2.pop %v368
  %v407 = vmul.f32 %v406, 0.6931472
  %v408 = vlog2.pop %v371
  %v409 = vmul.f32 %v408, 0.6931472
  %v410 = vlog2.pop %v374
  %v411 = vmul.f32 %v410, 0.6931472
  %v412 = vlog2.pop %v377
  %v413 = vmul.f32 %v412, 0.6931472
  %v414 = vlog2.pop %v380
  %v415 = vmul.f32 %v414, 0.6931472
  %v416 = vlog2.pop %v383
  %v417 = vmul.f32 %v416, 0.6931472
  %v418 = vlog2.pop %v386
  %v419 = vmul.f32 %v418, 0.6931472
  %v420 = vlog2.pop %v389
  %v421 = vmul.f32 %v420, 0.6931472
  %v422 = vadd.f32 %v248, %v391
  %v423 = vadd.f32 %v251, %v393
  %v424 = vadd.f32 %v254, %v395
  %v425 = vadd.f32 %v257, %v397
  %v426 = vadd.f32 %v260, %v399
  %v427 = vadd.f32 %v263, %v401
  %v428 = vadd.f32 %v266, %v403
  %v429 = vadd.f32 %v269, %v405
  %v430 = vadd.f32 %v272, %v407
  %v431 = vadd.f32 %v275, %v409
  %v432 = vadd.f32 %v278, %v411
  %v433 = vadd.f32 %v281, %v413
  %v434 = vadd.f32 %v284, %v415
  %v435 = vadd.f32 %v287, %v417
  %v436 = vadd.f32 %v290, %v419
  %v437 = vadd.f32 %v293, %v421
  %v438 = vsel %vm229, %v147, 0.0
  %v439 = vsel %vm230, %v148, 0.0
  %v440 = vsel %vm231, %v149, 0.0
  %v441 = vsel %vm232, %v150, 0.0
  %v442 = vsel %vm233, %v151, 0.0
  %v443 = vsel %vm234, %v152, 0.0
  %v444 = vsel %vm235, %v153, 0.0
  %v445 = vsel %vm236, %v154, 0.0
  %v446 = vsel %vm237, %v155, 0.0
  %v447 = vsel %vm238, %v156, 0.0
  %v448 = vsel %vm239, %v157, 0.0
  %v449 = vsel %vm240, %v158, 0.0
  %v450 = vsel %vm241, %v159, 0.0
  %v451 = vsel %vm242, %v160, 0.0
  %v452 = vsel %vm243, %v161, 0.0
  %v453 = vsel %vm244, %v162, 0.0
  %v454 = vsel %vm245, %v438, 0.0
  %455 = vadd.xlane.f32.xlu0 %v454
  %v456 = vpop.xlane.xlu0 %455
  %v457 = vsel %vm245, %v439, 0.0
  %458 = vadd.xlane.f32.xlu0 %v457
  %v459 = vpop.xlane.xlu0 %458
  %v460 = vsel %vm245, %v440, 0.0
  %461 = vadd.xlane.f32.xlu0 %v460
  %v462 = vpop.xlane.xlu0 %461
  %v463 = vsel %vm245, %v441, 0.0
  %464 = vadd.xlane.f32.xlu0 %v463
  %v465 = vpop.xlane.xlu0 %464
  %v466 = vsel %vm245, %v442, 0.0
  %467 = vadd.xlane.f32.xlu0 %v466
  %v468 = vpop.xlane.xlu0 %467
  %v469 = vsel %vm245, %v443, 0.0
  %470 = vadd.xlane.f32.xlu0 %v469
  %v471 = vpop.xlane.xlu0 %470
  %v472 = vsel %vm245, %v444, 0.0
  %473 = vadd.xlane.f32.xlu0 %v472
  %v474 = vpop.xlane.xlu0 %473
  %v475 = vsel %vm245, %v445, 0.0
  %476 = vadd.xlane.f32.xlu0 %v475
  %v477 = vpop.xlane.xlu0 %476
  %v478 = vsel %vm245, %v446, 0.0
  %479 = vadd.xlane.f32.xlu0 %v478
  %v480 = vpop.xlane.xlu0 %479
  %v481 = vsel %vm245, %v447, 0.0
  %482 = vadd.xlane.f32.xlu0 %v481
  %v483 = vpop.xlane.xlu0 %482
  %v484 = vsel %vm245, %v448, 0.0
  %485 = vadd.xlane.f32.xlu0 %v484
  %v486 = vpop.xlane.xlu0 %485
  %v487 = vsel %vm245, %v449, 0.0
  %488 = vadd.xlane.f32.xlu0 %v487
  %v489 = vpop.xlane.xlu0 %488
  %v490 = vsel %vm245, %v450, 0.0
  %491 = vadd.xlane.f32.xlu0 %v490
  %v492 = vpop.xlane.xlu0 %491
  %v493 = vsel %vm245, %v451, 0.0
  %494 = vadd.xlane.f32.xlu0 %v493
  %v495 = vpop.xlane.xlu0 %494
  %v496 = vsel %vm245, %v452, 0.0
  %497 = vadd.xlane.f32.xlu0 %v496
  %v498 = vpop.xlane.xlu0 %497
  %v499 = vsel %vm245, %v453, 0.0
  %500 = vadd.xlane.f32.xlu0 %v499
  %v501 = vpop.xlane.xlu0 %500
  %v502 = vsub.f32 %v422, %v456
  %v503 = vsub.f32 %v423, %v459
  %v504 = vsub.f32 %v424, %v462
  %v505 = vsub.f32 %v425, %v465
  %v506 = vsub.f32 %v426, %v468
  %v507 = vsub.f32 %v427, %v471
  %v508 = vsub.f32 %v428, %v474
  %v509 = vsub.f32 %v429, %v477
  %v510 = vsub.f32 %v430, %v480
  %v511 = vsub.f32 %v431, %v483
  %v512 = vsub.f32 %v432, %v486
  %v513 = vsub.f32 %v433, %v489
  %v514 = vsub.f32 %v434, %v492
  %v515 = vsub.f32 %v435, %v495
  %v516 = vsub.f32 %v436, %v498
  %v517 = vsub.f32 %v437, %v501
  %vm518 = vcmp.ne.s32.totalorder %v163, 0
  %vm519 = vcmp.ne.s32.totalorder %v164, 0
  %vm520 = vcmp.ne.s32.totalorder %v165, 0
  %vm521 = vcmp.ne.s32.totalorder %v166, 0
  %vm522 = vcmp.ne.s32.totalorder %v167, 0
  %vm523 = vcmp.ne.s32.totalorder %v168, 0
  %vm524 = vcmp.ne.s32.totalorder %v169, 0
  %vm525 = vcmp.ne.s32.totalorder %v170, 0
  %vm526 = vcmp.ne.s32.totalorder %v171, 0
  %vm527 = vcmp.ne.s32.totalorder %v172, 0
  %vm528 = vcmp.ne.s32.totalorder %v173, 0
  %vm529 = vcmp.ne.s32.totalorder %v174, 0
  %vm530 = vcmp.ne.s32.totalorder %v175, 0
  %vm531 = vcmp.ne.s32.totalorder %v176, 0
  %vm532 = vcmp.ne.s32.totalorder %v177, 0
  %vm533 = vcmp.ne.s32.totalorder %v178, 0
  %v534 = vsel %vm518, 1, 0
  %v535 = vsel %vm519, 1, 0
  %v536 = vsel %vm520, 1, 0
  %v537 = vsel %vm521, 1, 0
  %v538 = vsel %vm522, 1, 0
  %v539 = vsel %vm523, 1, 0
  %v540 = vsel %vm524, 1, 0
  %v541 = vsel %vm525, 1, 0
  %v542 = vsel %vm526, 1, 0
  %v543 = vsel %vm527, 1, 0
  %v544 = vsel %vm528, 1, 0
  %v545 = vsel %vm529, 1, 0
  %v546 = vsel %vm530, 1, 0
  %v547 = vsel %vm531, 1, 0
  %v548 = vsel %vm532, 1, 0
  %v549 = vsel %vm533, 1, 0
  %v550 = vcvt.s32.f32 %v534
  %v551 = vcvt.s32.f32 %v535
  %v552 = vcvt.s32.f32 %v536
  %v553 = vcvt.s32.f32 %v537
  %v554 = vcvt.s32.f32 %v538
  %v555 = vcvt.s32.f32 %v539
  %v556 = vcvt.s32.f32 %v540
  %v557 = vcvt.s32.f32 %v541
  %v558 = vcvt.s32.f32 %v542
  %v559 = vcvt.s32.f32 %v543
  %v560 = vcvt.s32.f32 %v544
  %v561 = vcvt.s32.f32 %v545
  %v562 = vcvt.s32.f32 %v546
  %v563 = vcvt.s32.f32 %v547
  %v564 = vcvt.s32.f32 %v548
  %v565 = vcvt.s32.f32 %v549
  %v566 = vld [vmem:[%s5] sm:$0xff]
  %v567 = vld [vmem:[%s5 + $0x8] sm:$0xff]
  %v568 = vld [vmem:[%s5 + $0x10] sm:$0xff]
  %v569 = vld [vmem:[%s5 + $0x18] sm:$0xff]
  %v570 = vld [vmem:[%s5 + $0x20] sm:$0xff]
  %v571 = vld [vmem:[%s5 + $0x28] sm:$0xff]
  %v572 = vld [vmem:[%s5 + $0x30] sm:$0xff]
  %v573 = vld [vmem:[%s5 + $0x38] sm:$0xff]
  %v574 = vld [vmem:[%s5 + $0x40] sm:$0xff]
  %v575 = vld [vmem:[%s5 + $0x48] sm:$0xff]
  %v576 = vld [vmem:[%s5 + $0x50] sm:$0xff]
  %v577 = vld [vmem:[%s5 + $0x58] sm:$0xff]
  %v578 = vld [vmem:[%s5 + $0x60] sm:$0xff]
  %v579 = vld [vmem:[%s5 + $0x68] sm:$0xff]
  %v580 = vld [vmem:[%s5 + $0x70] sm:$0xff]
  %v581 = vld [vmem:[%s5 + $0x78] sm:$0xff]
  %v582 = vmul.f32 %v502, %v550
  %v583 = vmul.f32 %v503, %v551
  %v584 = vmul.f32 %v504, %v552
  %v585 = vmul.f32 %v505, %v553
  %v586 = vmul.f32 %v506, %v554
  %v587 = vmul.f32 %v507, %v555
  %v588 = vmul.f32 %v508, %v556
  %v589 = vmul.f32 %v509, %v557
  %v590 = vmul.f32 %v510, %v558
  %v591 = vmul.f32 %v511, %v559
  %v592 = vmul.f32 %v512, %v560
  %v593 = vmul.f32 %v513, %v561
  %v594 = vmul.f32 %v514, %v562
  %v595 = vmul.f32 %v515, %v563
  %v596 = vmul.f32 %v516, %v564
  %v597 = vmul.f32 %v517, %v565
  %v598 = vadd.f32 %v566, %v582
  %v599 = vadd.f32 %v567, %v583
  %v600 = vadd.f32 %v568, %v584
  %v601 = vadd.f32 %v569, %v585
  %v602 = vadd.f32 %v570, %v586
  %v603 = vadd.f32 %v571, %v587
  %v604 = vadd.f32 %v572, %v588
  %v605 = vadd.f32 %v573, %v589
  %v606 = vadd.f32 %v574, %v590
  %v607 = vadd.f32 %v575, %v591
  %v608 = vadd.f32 %v576, %v592
  %v609 = vadd.f32 %v577, %v593
  %v610 = vadd.f32 %v578, %v594
  %v611 = vadd.f32 %v579, %v595
  %v612 = vadd.f32 %v580, %v596
  %v613 = vadd.f32 %v581, %v597
  %vm614 = vcmask 7168
  %615 = vst.msk [vmem:[%s5] sm:$0xff] %vm614, %v598
  %616 = vst.msk [vmem:[%s5 + $0x8] sm:$0xff] %vm614, %v599
  %617 = vst.msk [vmem:[%s5 + $0x10] sm:$0xff] %vm614, %v600
  %618 = vst.msk [vmem:[%s5 + $0x18] sm:$0xff] %vm614, %v601
  %619 = vst.msk [vmem:[%s5 + $0x20] sm:$0xff] %vm614, %v602
  %620 = vst.msk [vmem:[%s5 + $0x28] sm:$0xff] %vm614, %v603
  %621 = vst.msk [vmem:[%s5 + $0x30] sm:$0xff] %vm614, %v604
  %622 = vst.msk [vmem:[%s5 + $0x38] sm:$0xff] %vm614, %v605
  %623 = vst.msk [vmem:[%s5 + $0x40] sm:$0xff] %vm614, %v606
  %624 = vst.msk [vmem:[%s5 + $0x48] sm:$0xff] %vm614, %v607
  %625 = vst.msk [vmem:[%s5 + $0x50] sm:$0xff] %vm614, %v608
  %626 = vst.msk [vmem:[%s5 + $0x58] sm:$0xff] %vm614, %v609
  %627 = vst.msk [vmem:[%s5 + $0x60] sm:$0xff] %vm614, %v610
  %628 = vst.msk [vmem:[%s5 + $0x68] sm:$0xff] %vm614, %v611
  %629 = vst.msk [vmem:[%s5 + $0x70] sm:$0xff] %vm614, %v612
  %630 = vst.msk [vmem:[%s5 + $0x78] sm:$0xff] %vm614, %v613
  %v631 = vld [vmem:[%s6] sm:$0xff]
  %v632 = vld [vmem:[%s6 + $0x8] sm:$0xff]
  %v633 = vld [vmem:[%s6 + $0x10] sm:$0xff]
  %v634 = vld [vmem:[%s6 + $0x18] sm:$0xff]
  %v635 = vld [vmem:[%s6 + $0x20] sm:$0xff]
  %v636 = vld [vmem:[%s6 + $0x28] sm:$0xff]
  %v637 = vld [vmem:[%s6 + $0x30] sm:$0xff]
  %v638 = vld [vmem:[%s6 + $0x38] sm:$0xff]
  %v639 = vld [vmem:[%s6 + $0x40] sm:$0xff]
  %v640 = vld [vmem:[%s6 + $0x48] sm:$0xff]
  %v641 = vld [vmem:[%s6 + $0x50] sm:$0xff]
  %v642 = vld [vmem:[%s6 + $0x58] sm:$0xff]
  %v643 = vld [vmem:[%s6 + $0x60] sm:$0xff]
  %v644 = vld [vmem:[%s6 + $0x68] sm:$0xff]
  %v645 = vld [vmem:[%s6 + $0x70] sm:$0xff]
  %v646 = vld [vmem:[%s6 + $0x78] sm:$0xff]
  %v647 = vadd.f32 %v631, %v550
  %v648 = vadd.f32 %v632, %v551
  %v649 = vadd.f32 %v633, %v552
  %v650 = vadd.f32 %v634, %v553
  %v651 = vadd.f32 %v635, %v554
  %v652 = vadd.f32 %v636, %v555
  %v653 = vadd.f32 %v637, %v556
  %v654 = vadd.f32 %v638, %v557
  %v655 = vadd.f32 %v639, %v558
  %v656 = vadd.f32 %v640, %v559
  %v657 = vadd.f32 %v641, %v560
  %v658 = vadd.f32 %v642, %v561
  %v659 = vadd.f32 %v643, %v562
  %v660 = vadd.f32 %v644, %v563
  %v661 = vadd.f32 %v645, %v564
  %v662 = vadd.f32 %v646, %v565
  %663 = vst.msk [vmem:[%s6] sm:$0xff] %vm614, %v647
  %664 = vst.msk [vmem:[%s6 + $0x8] sm:$0xff] %vm614, %v648
  %665 = vst.msk [vmem:[%s6 + $0x10] sm:$0xff] %vm614, %v649
  %666 = vst.msk [vmem:[%s6 + $0x18] sm:$0xff] %vm614, %v650
  %667 = vst.msk [vmem:[%s6 + $0x20] sm:$0xff] %vm614, %v651
  %668 = vst.msk [vmem:[%s6 + $0x28] sm:$0xff] %vm614, %v652
  %669 = vst.msk [vmem:[%s6 + $0x30] sm:$0xff] %vm614, %v653
  %670 = vst.msk [vmem:[%s6 + $0x38] sm:$0xff] %vm614, %v654
  %671 = vst.msk [vmem:[%s6 + $0x40] sm:$0xff] %vm614, %v655
  %672 = vst.msk [vmem:[%s6 + $0x48] sm:$0xff] %vm614, %v656
  %673 = vst.msk [vmem:[%s6 + $0x50] sm:$0xff] %vm614, %v657
  %674 = vst.msk [vmem:[%s6 + $0x58] sm:$0xff] %vm614, %v658
  %675 = vst.msk [vmem:[%s6 + $0x60] sm:$0xff] %vm614, %v659
  %676 = vst.msk [vmem:[%s6 + $0x68] sm:$0xff] %vm614, %v660
  %677 = vst.msk [vmem:[%s6 + $0x70] sm:$0xff] %vm614, %v661
  %678 = vst.msk [vmem:[%s6 + $0x78] sm:$0xff] %vm614, %v662
  %v679 = vld [vmem:[%s97] sm:$0x1]
  %v680 = vld [vmem:[%s102] sm:$0x1]
  %v681 = vld [vmem:[%s107] sm:$0x1]
  %vm682 = vcmp.eq.s32.totalorder %v681, 0
  %v683 = vsub.f32 %v680, %v679
  %v684 = vsub.f32 %v679, %v680
  %v685 = vsel %vm682, %v683, %v684
  %v686 = vmax.f32 %v685, 0.0
  %v687 = vand.u32 2147483647, %v685
  %v688 = vsub.f32 0.0, %v687
  %v689 = vmul.f32 %v688, 1.442695
  %v690 = vpow.pop %v689
  %v691 = vadd.f32 %v690, 1.0
  %v692 = vlog2.pop %v691
  %v693 = vmul.f32 %v692, 0.6931472
  %v694 = vadd.f32 %v686, %v693
  %v695 = vsub.f32 0.0, %v694
  %v696 = vmul.f32 %v695, 1.442695
  %v697 = vpow.pop %v696
  %v698 = vsub.f32 1.0, %v697
  %v699 = vmax.f32 %v698, 0.0
  %s700 = sadd.s32 0, 0
  %v701 = vlaneseq
  %v702 = vshrl.u32 %v701, 7
  %s703 = smul.u32 %s700, 128
  %v704 = vmul.u32 %v702, 128
  %v705 = vstv %s703
  %v706 = vadd.s32 %v705, %v704
  %v707 = vadd.s32 %v706, %v180
  %vm708 = vcmp.lt.s32.totalorder %v707, 16
  %v709 = vsel %vm708, 1, 0
  %v710 = vcvt.s32.f32 %v709
  %v711 = vld [vmem:[%s7] sm:$0x1]
  %v712 = vmul.f32 %v699, %v694
  %v713 = vmul.f32 %v712, %v710
  %v714 = vadd.f32 %v711, %v713
  %715 = vst [vmem:[%s7] sm:$0x1] %v714
  // Predicated region
  $region26: #{weakly_loss.1} parent=0 // pred_check
    _
  $region27: #{weakly_loss.1} parent=0 // pred_check_branch
    %717 = sbr.rel (0) target = $region29
  $region28: #{weakly_loss.1} parent=0 // pred_region
    _
  $region29: #{weakly_loss.1} parent=0 // pred_fallthru
    _
  // Predicated region
  $region30: #{weakly_loss.1} parent=0 // pred_check
    _
  $region31: #{weakly_loss.1} parent=0 // pred_check_branch
    %719 = sbr.rel (0) target = $region33
  $region32: #{weakly_loss.1} parent=0 // pred_region
    _
  $region33: #{weakly_loss.1} parent=0 // pred_fallthru
    _
  // Predicated region
  $region34: #{weakly_loss.1} parent=0 // pred_check
    _
  $region35: #{weakly_loss.1} parent=0 // pred_check_branch
    %721 = sbr.rel (0) target = $region37
  $region36: #{weakly_loss.1} parent=0 // pred_region
    _
  $region37: #{weakly_loss.1} parent=0 // pred_fallthru
    _
  // Predicated region
  $region38: #{weakly_loss.1} parent=0 // pred_check
    _
  $region39: #{weakly_loss.1} parent=0 // pred_check_branch
    %723 = sbr.rel (0) target = $region41
  $region40: #{weakly_loss.1} parent=0 // pred_region
    _
  $region41: #{weakly_loss.1} parent=0 // pred_fallthru
    _
  // Predicated region
  $region42: #{weakly_loss.1} parent=0 // pred_check
    _
  $region43: #{weakly_loss.1} parent=0 // pred_check_branch
    %725 = sbr.rel (0) target = $region45
  $region44: #{weakly_loss.1} parent=0 // pred_region
    _
  $region45: #{weakly_loss.1} parent=0 // pred_fallthru
    _
  // Predicated region
  $region46: #{weakly_loss.1} parent=0 // pred_check
    _
  $region47: #{weakly_loss.1} parent=0 // pred_check_branch
    %727 = sbr.rel (0) target = $region49
  $region48: #{weakly_loss.1} parent=0 // pred_region
    _
  $region49: #{weakly_loss.1} parent=0 // pred_fallthru
    _

</llo_original>
